<compile_context>
chip_gen: v7x
topology: tpu7x:2x2x1
jax: 0.10.0
libtpu: 0.0.40
codegen_flags: <defaults>
</compile_context>

<pallas_src>
import functools

import jax
import jax.numpy as jnp
from jax.experimental import pallas as pl
from jax.experimental.pallas import tpu as pltpu


def _label_smoothing_kernel(x_ref, t_ref, out_ref, acc_ref, *,
                            w_hot, w_base, n_total, block_rows,
                            blocks_per_split, needs_mask):
    i = pl.program_id(1)

    @pl.when(i == 0)
    def _():
        acc_ref[...] = jnp.zeros_like(acc_ref)

    x = x_ref[...].astype(jnp.float32)                    # (tm, C)

    # Row-wise logsumexp (lane reductions), keepdims -> (tm, 1).
    m = jnp.max(x, axis=-1, keepdims=True)
    s = jnp.sum(jnp.exp(x - m), axis=-1, keepdims=True)
    lse = m + jnp.log(s)

    # Fused target-gather + mean: loss = lse - sum_j(w_j * x_j) with
    # w_j = smoothing/C + confidence * 1[j == target].
    t = t_ref[...]                                        # (tm, 1) int32
    col = jax.lax.broadcasted_iota(jnp.int32, x.shape, 1)
    w = jnp.where(col == t, jnp.float32(w_hot), jnp.float32(w_base))
    wsum = jnp.sum(w * x, axis=-1, keepdims=True)
    loss = lse - wsum                                     # (tm, 1)

    if needs_mask:
        # Zero tail / phantom rows with a select (NaN-safe for garbage rows).
        gblk = pl.program_id(0) * blocks_per_split + i
        row = jax.lax.broadcasted_iota(jnp.int32, loss.shape, 0)
        loss = jnp.where(row + gblk * block_rows < n_total, loss, 0.0)

    # Elementwise vector accumulate; no per-step cross-sublane reduce.
    acc_ref[...] += loss

    @pl.when(i == pl.num_programs(1) - 1)
    def _():
        total = jnp.sum(acc_ref[...])                     # one XLU reduce/split
        out_ref[...] = jnp.broadcast_to(total, out_ref.shape)


def _round_up(v, m):
    return ((v + m - 1) // m) * m


def label_smoothing_loss(x, target, smoothing=0.1, block_rows=None,
                         vmem_limit_bytes=None):
    """Pallas equivalent of LabelSmoothing.forward(x, target) -> scalar.

    x: (N, C) logits, float32 or bfloat16 (bf16 is NOT upcast in the wrapper).
    target: (N,) integer class indices.
    """
    n, c = x.shape
    confidence = 1.0 - smoothing
    itemsize = jnp.dtype(x.dtype).itemsize

    # Chip-aware VMEM budgeting: v7x has 64 MiB VMEM, v5e/v6e have 128 MiB.
    vmem_cap = 64 * 1024 * 1024
    try:
        info = pltpu.get_tpu_info()
        vmem_cap = int(getattr(info, "vmem_capacity_bytes", vmem_cap))
    except Exception:
        pass
    big_vmem = vmem_cap >= (100 << 20)
    # Budget the row tile on its f32 working footprint (kernel casts to f32).
    f32_budget = (12 << 20) if big_vmem else (6 << 20)

    if block_rows is None:
        block_rows = f32_budget // max(1, c * 4)
    block_rows = max(8, min(4096, (block_rows // 8) * 8))   # sublane multiple
    block_rows = min(block_rows, _round_up(n, 8))           # don't over-size tiny N

    num_blocks = pl.cdiv(n, block_rows)
    # Two row-range splits so v7x's 2 TensorCores each stream half the rows
    # (on 1-TC chips this is just an outer loop of length 2).
    n_splits = 2 if num_blocks >= 2 else 1
    blocks_per_split = pl.cdiv(num_blocks, n_splits)
    needs_mask = (n_splits * blocks_per_split * block_rows) != n

    if vmem_limit_bytes is None:
        x_tile_in = block_rows * c * itemsize                # HBM-side tile
        x_tile_f32 = block_rows * c * 4                      # f32 working tile
        narrow = block_rows * 128 * 4                        # lane-padded (tm,1)
        est = 2 * x_tile_in + 3 * x_tile_f32 + 3 * narrow + (2 << 20)
        vmem_limit_bytes = max(32 << 20, min(est, (vmem_cap * 3) // 4))

    t2d = target.astype(jnp.int32).reshape(n, 1)

    kernel = functools.partial(
        _label_smoothing_kernel,
        w_hot=confidence + smoothing / c,
        w_base=smoothing / c,
        n_total=n,
        block_rows=block_rows,
        blocks_per_split=blocks_per_split,
        needs_mask=needs_mask,
    )

    def row_map(split, i):
        # Clamp so phantom trailing blocks (num_blocks % n_splits != 0) re-read
        # the last valid block instead of DMA-ing out of bounds; the in-kernel
        # row mask zeroes their contribution.
        return (jnp.minimum(split * blocks_per_split + i, num_blocks - 1), 0)

    out = pl.pallas_call(
        kernel,
        out_shape=jax.ShapeDtypeStruct((n_splits, 8, 128), jnp.float32),
        grid_spec=pltpu.PrefetchScalarGridSpec(
            num_scalar_prefetch=0,
            grid=(n_splits, blocks_per_split),
            in_specs=[
                pl.BlockSpec((block_rows, c), row_map),
                pl.BlockSpec((block_rows, 1), row_map),
            ],
            out_specs=pl.BlockSpec((1, 8, 128), lambda s, i: (s, 0, 0)),
            scratch_shapes=[pltpu.VMEM((block_rows, 1), jnp.float32)],
        ),
        compiler_params=pltpu.CompilerParams(
            dimension_semantics=("parallel", "arbitrary"),
            vmem_limit_bytes=int(vmem_limit_bytes),
        ),
        cost_estimate=pl.CostEstimate(
            flops=6 * n * c,
            transcendentals=n * c,
            bytes_accessed=n * c * itemsize + n * 4 + n_splits * 8 * 128 * 4,
        ),
    )(x, t2d)
    return jnp.sum(out[:, 0, 0]) / jnp.float32(n)


def _reference(x, target, smoothing=0.1):
    confidence = 1.0 - smoothing
    logprobs = jax.nn.log_softmax(x.astype(jnp.float32), axis=-1)
    nll = -jnp.take_along_axis(logprobs, target[:, None], axis=-1)[:, 0]
    smooth = -jnp.mean(logprobs, axis=-1)
    return jnp.mean(confidence * nll + smoothing * smooth)


if __name__ == "__main__":
    key = jax.random.PRNGKey(0)
    kx, kt, kx2, kt2, kx3, kt3 = jax.random.split(key, 6)

    # Small shapes consistent with the module's forward: (batch, classes).
    N, C = 16, 32
    x = jax.random.normal(kx, (N, C), dtype=jnp.float32)
    target = jax.random.randint(kt, (N,), 0, C, dtype=jnp.int32)
    loss = jax.block_until_ready(label_smoothing_loss(x, target, smoothing=0.1))
    ref = _reference(x, target, smoothing=0.1)
    assert jnp.allclose(loss, ref, atol=1e-5, rtol=1e-4), (loss, ref)

    # Ragged batch + bf16 logits: exercises the no-pad tail-mask path.
    N2 = 13
    x2 = jax.random.normal(kx2, (N2, C), dtype=jnp.bfloat16)
    t2 = jax.random.randint(kt2, (N2,), 0, C, dtype=jnp.int32)
    loss2 = jax.block_until_ready(label_smoothing_loss(x2, t2, smoothing=0.1))
    ref2 = _reference(x2, t2, smoothing=0.1)
    assert jnp.allclose(loss2, ref2, atol=1e-2, rtol=1e-2), (loss2, ref2)

    # Multi-block + 2-way split + phantom & partial tail blocks (clamp path).
    N3 = 35
    x3 = jax.random.normal(kx3, (N3, C), dtype=jnp.float32)
    t3 = jax.random.randint(kt3, (N3,), 0, C, dtype=jnp.int32)
    loss3 = jax.block_until_ready(
        label_smoothing_loss(x3, t3, smoothing=0.1, block_rows=8))
    ref3 = _reference(x3, t3, smoothing=0.1)
    assert jnp.allclose(loss3, ref3, atol=1e-5, rtol=1e-4), (loss3, ref3)

    print("KERNEL_OK")
</pallas_src>

<mosaic_0001>
module attributes {stable_mosaic.version = 11 : i64} {
  func.func @_label_smoothing_kernel(%arg0: i32, %arg1: i32, %arg2: memref<16x32xf32, #tpu.memory_space<vmem>>, %arg3: memref<16x1xi32, #tpu.memory_space<vmem>>, %arg4: memref<1x8x128xf32, #tpu.memory_space<vmem>>, %arg5: memref<16x1xf32, #tpu.memory_space<vmem>>) attributes {dimension_semantics = [#tpu.dimension_semantics<parallel>, #tpu.dimension_semantics<arbitrary>], iteration_bounds = array<i64: 1, 1>, scalar_prefetch = 0 : i64, scratch_operands = 1 : i64, tpu.core_type = #tpu.core_type<tc>, window_params = [{transform_indices = @transform_0, window_bounds = array<i64: 16, 32>}, {transform_indices = @transform_1, window_bounds = array<i64: 16, 1>}, {transform_indices = @transform_2, window_bounds = array<i64: 1, 8, 128>}]} {
    %c0_i32 = arith.constant 0 : i32
    %0 = arith.cmpi eq, %arg1, %c0_i32 : i32
    %1 = arith.extui %0 : i1 to i32
    %c0_i32_0 = arith.constant 0 : i32
    %2 = arith.cmpi ne, %1, %c0_i32_0 : i32
    scf.if %2 {
      %cst_14 = arith.constant 0.000000e+00 : f32
      %30 = vector.broadcast %cst_14 : f32 to vector<16x1xf32>
      %c0_15 = arith.constant 0 : index
      %c0_16 = arith.constant 0 : index
      %31 = vector.load %arg5[%c0_15, %c0_16] : memref<16x1xf32, #tpu.memory_space<vmem>>, vector<16x1xf32>
      tpu.vector_store %arg5[%c0_15, %c0_16], %30 {strides = array<i32>} : memref<16x1xf32, #tpu.memory_space<vmem>>, vector<16x1xf32>,
    } else {
    }
    %c0 = arith.constant 0 : index
    %c0_1 = arith.constant 0 : index
    %3 = vector.load %arg2[%c0, %c0_1] : memref<16x32xf32, #tpu.memory_space<vmem>>, vector<16x32xf32>
    %cst = arith.constant dense<0xFF800000> : vector<16xf32>
    %4 = vector.multi_reduction <maximumf>, %3, %cst [1] : vector<16x32xf32> to vector<16xf32>
    %5 = vector.shape_cast %4 : vector<16xf32> to vector<16x1xf32>
    %6 = vector.broadcast %5 : vector<16x1xf32> to vector<16x32xf32>
    %7 = arith.subf %3, %6 : vector<16x32xf32>
    %8 = math.exp %7 : vector<16x32xf32>
    %cst_2 = arith.constant dense<0.000000e+00> : vector<16xf32>
    %9 = vector.multi_reduction <add>, %8, %cst_2 [1] : vector<16x32xf32> to vector<16xf32>
    %10 = vector.shape_cast %9 : vector<16xf32> to vector<16x1xf32>
    %11 = math.log %10 : vector<16x1xf32>
    %12 = arith.addf %5, %11 : vector<16x1xf32>
    %c0_3 = arith.constant 0 : index
    %c0_4 = arith.constant 0 : index
    %13 = vector.load %arg3[%c0_3, %c0_4] : memref<16x1xi32, #tpu.memory_space<vmem>>, vector<16x1xi32>
    %14 = tpu.iota {dimensions = array<i32: 1>} : vector<16x32xi32>
    %15 = vector.broadcast %13 : vector<16x1xi32> to vector<16x32xi32>
    %16 = arith.cmpi eq, %14, %15 : vector<16x32xi32>
    %cst_5 = arith.constant 0.903124988 : f32
    %cst_6 = arith.constant 3.125000e-03 : f32
    %17 = vector.broadcast %cst_5 : f32 to vector<16x32xf32>
    %18 = vector.broadcast %cst_6 : f32 to vector<16x32xf32>
    %19 = arith.select %16, %17, %18 : vector<16x32xi1>, vector<16x32xf32>
    %20 = arith.mulf %19, %3 : vector<16x32xf32>
    %cst_7 = arith.constant dense<0.000000e+00> : vector<16xf32>
    %21 = vector.multi_reduction <add>, %20, %cst_7 [1] : vector<16x32xf32> to vector<16xf32>
    %22 = vector.shape_cast %21 : vector<16xf32> to vector<16x1xf32>
    %23 = arith.subf %12, %22 : vector<16x1xf32>
    %c0_8 = arith.constant 0 : index
    %c0_9 = arith.constant 0 : index
    %24 = vector.load %arg5[%c0_8, %c0_9] : memref<16x1xf32, #tpu.memory_space<vmem>>, vector<16x1xf32>
    %25 = arith.addf %24, %23 : vector<16x1xf32>
    %c0_10 = arith.constant 0 : index
    %c0_11 = arith.constant 0 : index
    %26 = vector.load %arg5[%c0_10, %c0_11] : memref<16x1xf32, #tpu.memory_space<vmem>>, vector<16x1xf32>
    tpu.vector_store %arg5[%c0_10, %c0_11], %25 {strides = array<i32>} : memref<16x1xf32, #tpu.memory_space<vmem>>, vector<16x1xf32>,
    %c0_i32_12 = arith.constant 0 : i32
    %27 = arith.cmpi eq, %arg1, %c0_i32_12 : i32
    %28 = arith.extui %27 : i1 to i32
    %c0_i32_13 = arith.constant 0 : i32
    %29 = arith.cmpi ne, %28, %c0_i32_13 : i32
    scf.if %29 {
      %c0_14 = arith.constant 0 : index
      %c0_15 = arith.constant 0 : index
      %30 = vector.load %arg5[%c0_14, %c0_15] : memref<16x1xf32, #tpu.memory_space<vmem>>, vector<16x1xf32>
      %31 = vector.shape_cast %30 : vector<16x1xf32> to vector<1x16x1xf32>
      %cst_16 = arith.constant dense<0.000000e+00> : vector<1xf32>
      %32 = vector.multi_reduction <add>, %31, %cst_16 [1, 2] : vector<1x16x1xf32> to vector<1xf32>
      %33 = vector.shape_cast %32 : vector<1xf32> to vector<1x1x1xf32>
      %34 = vector.extract %33[0, 0, 0] : f32 from vector<1x1x1xf32>
      %35 = vector.broadcast %34 : f32 to vector<1x8x128xf32>
      %c0_17 = arith.constant 0 : index
      %c0_18 = arith.constant 0 : index
      %c0_19 = arith.constant 0 : index
      %36 = vector.load %arg4[%c0_17, %c0_18, %c0_19] : memref<1x8x128xf32, #tpu.memory_space<vmem>>, vector<1x8x128xf32>
      tpu.vector_store %arg4[%c0_17, %c0_18, %c0_19], %35 {strides = array<i32>} : memref<1x8x128xf32, #tpu.memory_space<vmem>>, vector<1x8x128xf32>,
    } else {
    }
    return
  }
  func.func @transform_0(%arg0: i32, %arg1: i32) -> (i32, i32) {
    %c1_i32 = arith.constant 1 : i32
    %0 = arith.muli %arg0, %c1_i32 : i32
    %1 = arith.addi %0, %arg1 : i32
    %c0_i32 = arith.constant 0 : i32
    %2 = arith.minsi %1, %c0_i32 : i32
    %c0_i32_0 = arith.constant 0 : i32
    %c0_i32_1 = arith.constant 0 : i32
    return %2, %c0_i32_0 : i32, i32
  }
  func.func @transform_1(%arg0: i32, %arg1: i32) -> (i32, i32) {
    %c1_i32 = arith.constant 1 : i32
    %0 = arith.muli %arg0, %c1_i32 : i32
    %1 = arith.addi %0, %arg1 : i32
    %c0_i32 = arith.constant 0 : i32
    %2 = arith.minsi %1, %c0_i32 : i32
    %c0_i32_0 = arith.constant 0 : i32
    %c0_i32_1 = arith.constant 0 : i32
    return %2, %c0_i32_0 : i32, i32
  }
  func.func @transform_2(%arg0: i32, %arg1: i32) -> (i32, i32, i32) {
    %c0_i32 = arith.constant 0 : i32
    %c0_i32_0 = arith.constant 0 : i32
    %c0_i32_1 = arith.constant 0 : i32
    return %arg0, %c0_i32, %c0_i32_0 : i32, i32, i32
  }
}

</mosaic_0001>

<llo_original>
// kernel: tpu_custom_call.1
$region0: #{tpu_custom_call.1}
  #allocation0 [shape = 'u32[]', space=smem, size = 0x4, offset = 0x4, fixed_abs, tag = 'smem constant byte address 0x4 - core index']
  #allocation1 [shape = 'u32[144,128]{1,0:T(1,128)}', space=vmem, size = 0x12000, scoped, tag = 'internal scratch']
  #allocation2 [shape = 'f32[16,1]{1,0:T(8,128)}', space=vmem, size = 0x2000, scoped, tag = 'scratch operand']
  %s0 = inlined_call_operand.vmem [shape: f32[16,32], index: 0, kind: input, shape index: {}]
  %s1 = inlined_call_operand.vmem [shape: s32[16,1], index: 1, kind: input, shape index: {}]
  %s2 = inlined_call_operand.hbm [shape: f32[1,8,128], index: 2, kind: output, shape index: {}]
  %s3 = sld [smem:[#allocation0]]
  $region26: #{tpu_custom_call.1} parent=0
    _
  %s5 = ssub.s32 1, %s3
  %s6 = scalar_select 0, %s5, %s3
  $region1: #{tpu_custom_call.1} parent=0
    #allocation3 [shape = 'u8[4096]{0}', space=vmem, size = 0x1000, scoped, tag = 'output window, operand 0, single buffered']
    #allocation4 [shape = 's32[1]{0}', space=sflag, size = 0x4, scoped, tag = 'scoped memory for tpu_custom_call.1']
    %7 = vsyncpa [#allocation4], 0
    // Predicated region
    $region2: #{tpu_custom_call.1} parent=1 // pred_check
      _
    $region3: #{tpu_custom_call.1} parent=1 // pred_check_branch
      %9 = sbr.rel (0) target = $region5
    $region4: #{tpu_custom_call.1} parent=1 // pred_region
      %s10 = sadd.s32 0, 0
      %p11 = scmp.lt.s32.totalorder %s10, 0
      %s12 = scalar_select %p11, %s10, 0
      %s13 = smul.u32 2, %s12
      %p14 = scmp.lt.s32.totalorder %s13, 1
      %s15 = scalar_select %p14, %s13, 1
      %s16 = smul.addr %s15, 8
      %s17 = scalar_lea.vmem %s0, %s16
      %s18 = sadd.s32 0, 0
      %p19 = scmp.lt.s32.totalorder %s18, 0
      %s20 = scalar_select %p19, %s18, 0
      %s21 = smul.u32 2, %s20
    $region5: #{tpu_custom_call.1} parent=1 // pred_fallthru
      _
    // Predicated region
    $region6: #{tpu_custom_call.1} parent=1 // pred_check
      _
    $region7: #{tpu_custom_call.1} parent=1 // pred_check_branch
      %23 = sbr.rel (0) target = $region9
    $region8: #{tpu_custom_call.1} parent=1 // pred_region
      %s24 = sadd.s32 0, 0
      %p25 = scmp.lt.s32.totalorder %s24, 0
      %s26 = scalar_select %p25, %s24, 0
      %s27 = smul.u32 2, %s26
      %p28 = scmp.lt.s32.totalorder %s27, 1
      %s29 = scalar_select %p28, %s27, 1
      %s30 = smul.addr %s29, 8
      %s31 = scalar_lea.vmem %s1, %s30
      %s32 = sadd.s32 0, 0
      %p33 = scmp.lt.s32.totalorder %s32, 0
      %s34 = scalar_select %p33, %s32, 0
      %s35 = smul.u32 2, %s34
    $region9: #{tpu_custom_call.1} parent=1 // pred_fallthru
      _
    %s36 = sadd.s32 0, 0
    %p37 = scmp.lt.s32.totalorder %s36, 0
    %s38 = scalar_select %p37, %s36, 0
    %s39 = smul.u32 2, %s38
    %p40 = scmp.lt.s32.totalorder %s39, 1
    %s41 = scalar_select %p40, %s39, 1
    %s42 = smul.addr %s41, 8
    %s43 = scalar_lea.vmem %s0, %s42
    %s44 = sadd.s32 0, 0
    %p45 = scmp.lt.s32.totalorder %s44, 0
    %s46 = scalar_select %p45, %s44, 0
    %s47 = smul.u32 2, %s46
    %p48 = scmp.lt.s32.totalorder %s47, 1
    %s49 = scalar_select %p48, %s47, 1
    %s50 = smul.addr %s49, 8
    %s51 = scalar_lea.vmem %s1, %s50
    %s52 = sadd.s32 0, 0
    %p53 = scmp.lt.s32.totalorder %s52, 0
    %s54 = scalar_select %p53, %s52, 0
    %s55 = smul.u32 2, %s54
    %p56 = scmp.lt.s32.totalorder %s55, 1
    %s57 = scalar_select %p56, %s55, 1
    %s58 = smul.addr %s57, 8
    %s59 = scalar_lea.vmem %s0, %s58
    %s60 = sadd.s32 0, 0
    %p61 = scmp.lt.s32.totalorder %s60, 0
    %s62 = scalar_select %p61, %s60, 0
    %s63 = smul.u32 2, %s62
    %s64 = sadd.s32 0, 0
    %p65 = scmp.lt.s32.totalorder %s64, 0
    %s66 = scalar_select %p65, %s64, 0
    %s67 = smul.u32 2, %s66
    %p68 = scmp.lt.s32.totalorder %s67, 1
    %s69 = scalar_select %p68, %s67, 1
    %s70 = smul.addr %s69, 8
    %s71 = scalar_lea.vmem %s1, %s70
    %s72 = sadd.s32 0, 0
    %p73 = scmp.lt.s32.totalorder %s72, 0
    %s74 = scalar_select %p73, %s72, 0
    %s75 = smul.u32 2, %s74
    %p76 = scmp.eq.s32.totalorder 0, 0
    // Predicated region
    $region10: #{tpu_custom_call.1} parent=1 // pred_check
      %p77 = pneg %p76
    $region11: #{tpu_custom_call.1} parent=1 // pred_check_branch
      %79 = sbr.rel (%p77) target = $region13
    $region12: #{tpu_custom_call.1} parent=1 // pred_region
      %vm80 = vcmask 7168
      %81 = vst.msk [vmem:[#allocation2] sm:$0xff] %vm80, 0.0
      %82 = vst.msk [vmem:[#allocation2 + $0x8] sm:$0xff] %vm80, 0.0
    $region13: #{tpu_custom_call.1} parent=1 // pred_fallthru
      _
    %v83 = vld [vmem:[%s59] sm:$0xff]
    %v84 = vld [vmem:[%s59 + $0x8] sm:$0xff]
    %vm85 = vcmask 261120
    %v86 = vsel %vm85, %v83, -inf
    %87 = vmax.xlane.f32.xlu0 %v86
    %v88 = vpop.xlane.xlu0 %87
    %v89 = vsel %vm85, %v84, -inf
    %90 = vmax.xlane.f32.xlu0 %v89
    %v91 = vpop.xlane.xlu0 %90
    %v92 = vsub.f32 %v83, %v88
    %v93 = vsub.f32 %v84, %v91
    %v94 = vmul.f32 %v92, 1.442695
    %v95 = vpow.pop %v94
    %v96 = vmul.f32 %v93, 1.442695
    %v97 = vpow.pop %v96
    %v98 = vsel %vm85, %v95, 0.0
    %99 = vadd.xlane.f32.xlu0 %v98
    %v100 = vpop.xlane.xlu0 %99
    %v101 = vsel %vm85, %v97, 0.0
    %102 = vadd.xlane.f32.xlu0 %v101
    %v103 = vpop.xlane.xlu0 %102
    %v104 = vlog2.pop %v100
    %v105 = vmul.f32 %v104, 0.6931472
    %v106 = vlog2.pop %v103
    %v107 = vmul.f32 %v106, 0.6931472
    %v108 = vadd.f32 %v88, %v105
    %v109 = vadd.f32 %v91, %v107
    %v110 = vld [vmem:[%s71] sm:$0xff]
    %v111 = vld [vmem:[%s71 + $0x8] sm:$0xff]
    %v112 = vlaneseq
    %v113 = vand.u32 %v112, 127
    %114 = vset.pattern.permute.xlu0 0
    %115 = vperm.xlu0 %114, %v110
    %v116 = vpop.permute.xlu0 %115
    %117 = vset.pattern.permute.xlu0 0
    %118 = vperm.xlu0 %117, %v111
    %v119 = vpop.permute.xlu0 %118
    %vm120 = vcmp.eq.s32.totalorder %v113, %v116
    %vm121 = vcmp.eq.s32.totalorder %v113, %v119
    %v122 = vsel %vm120, 0.903125, 0.003125
    %v123 = vsel %vm121, 0.903125, 0.003125
    %v124 = vmul.f32 %v122, %v83
    %v125 = vmul.f32 %v123, %v84
    %v126 = vsel %vm85, %v124, 0.0
    %127 = vadd.xlane.f32.xlu0 %v126
    %v128 = vpop.xlane.xlu0 %127
    %v129 = vsel %vm85, %v125, 0.0
    %130 = vadd.xlane.f32.xlu0 %v129
    %v131 = vpop.xlane.xlu0 %130
    %v132 = vsub.f32 %v108, %v128
    %v133 = vsub.f32 %v109, %v131
    %v134 = vld [vmem:[#allocation2] sm:$0xff]
    %v135 = vld [vmem:[#allocation2 + $0x8] sm:$0xff]
    %v136 = vadd.f32 %v134, %v132
    %v137 = vadd.f32 %v135, %v133
    %vm138 = vcmask 7168
    %139 = vst.msk [vmem:[#allocation2] sm:$0xff] %vm138, %v136
    %140 = vst.msk [vmem:[#allocation2 + $0x8] sm:$0xff] %vm138, %v137
    // Predicated region
    $region14: #{tpu_custom_call.1} parent=1 // pred_check
      %p141 = pneg %p76
    $region15: #{tpu_custom_call.1} parent=1 // pred_check_branch
      %143 = sbr.rel (%p141) target = $region17
    $region16: #{tpu_custom_call.1} parent=1 // pred_region
      %v144 = vld [vmem:[#allocation2] sm:$0xff]
      %v145 = vld [vmem:[#allocation2 + $0x8] sm:$0xff]
      %v146 = vsel %vm138, %v144, 0.0
      %v147 = vsel %vm138, %v145, 0.0
      %v148 = vadd.f32 %v146, %v147
      %149 = vadd.xlane.f32.xlu0 %v148
      %v150 = vpop.xlane.xlu0 %149
      %v151 = vrot.slane %v150, 4
      %v152 = vadd.f32 %v150, %v151
      %v153 = vrot.slane %v152, 2
      %v154 = vadd.f32 %v152, %v153
      %v155 = vrot.slane %v154, 1
      %v156 = vadd.f32 %v154, %v155
      %s157 = vtos %v156
      %v158 = vstv %s157
      %159 = vst [vmem:[#allocation3] sm:$0xff] %v158
    $region17: #{tpu_custom_call.1} parent=1 // pred_fallthru
      _
    // Predicated region
    $region18: #{tpu_custom_call.1} parent=1 // pred_check
      _
    $region19: #{tpu_custom_call.1} parent=1 // pred_check_branch
      %161 = sbr.rel (0) target = $region21
    $region20: #{tpu_custom_call.1} parent=1 // pred_region
      %s163 = ssub.s32 128, 128
      %164 = vsyncadd [#allocation4], %s163
      %s166 = sshll.u32 [#allocation3], 4
      %s167 = int_to_ptr.vmem [resolvable:$true] %s166
      %169 = dma.vmem_to_hbm [thread:$0]  %s167, 128, %s2, [#allocation4]
    $region21: #{tpu_custom_call.1} parent=1 // pred_fallthru
      _
    // Predicated region
    $region22: #{tpu_custom_call.1} parent=1 // pred_check
      _
    $region23: #{tpu_custom_call.1} parent=1 // pred_check_branch
      %171 = sbr.rel (0) target = $region25
    $region24: #{tpu_custom_call.1} parent=1 // pred_region
      %172 = dma.done [#allocation4], 128
    $region25: #{tpu_custom_call.1} parent=1 // pred_fallthru
      _
    %173 = vsyncpa [#allocation4], 1

</llo_original>
